<compile_context>
chip_gen: v7x
topology: tpu7x:2x2x1
jax: 0.10.0
libtpu: 0.0.40
codegen_flags: <defaults>
</compile_context>

<pallas_src>
import math

import jax
import jax.numpy as jnp
from jax.experimental import pallas as pl
from jax.experimental.pallas import tpu as pltpu

_MIB = 1024 * 1024


# ---------------------------------------------------------------------------
# Kernels
# ---------------------------------------------------------------------------

def _einmix_resident_kernel(x_ref, w_ref, b_ref, o_ref):
    """Weight-resident path: W / bias are full-extent blocks, grid runs over M."""
    acc = jnp.dot(x_ref[...], w_ref[...], preferred_element_type=jnp.float32)
    o_ref[...] = (acc + b_ref[...]).astype(o_ref.dtype)


def _einmix_tiled_kernel(x_ref, w_ref, b_ref, o_ref, acc_ref):
    """General (M, N, K)-tiled path with f32 accumulator, K innermost."""
    k = pl.program_id(2)

    @pl.when(k == 0)
    def _():
        acc_ref[...] = jnp.zeros_like(acc_ref)

    acc_ref[...] += jnp.dot(x_ref[...], w_ref[...],
                            preferred_element_type=jnp.float32)

    @pl.when(k == pl.num_programs(2) - 1)
    def _():
        o_ref[...] = (acc_ref[...] + b_ref[...]).astype(o_ref.dtype)


# ---------------------------------------------------------------------------
# Sizing helpers
# ---------------------------------------------------------------------------

def _round_up(x, m):
    return ((x + m - 1) // m) * m


def _vmem_capacity_bytes():
    """Physical VMEM of the local chip; conservative 64 MiB (v7x) fallback."""
    try:
        info = pltpu.get_tpu_info()
        for attr in ("vmem_capacity_bytes", "vmem_size_bytes", "vmem_bytes"):
            v = getattr(info, attr, None)
            if v:
                return int(min(max(int(v), 32 * _MIB), 128 * _MIB))
    except Exception:  # off-TPU / API drift: stay conservative
        pass
    return 64 * _MIB


def _vmem_limit(footprint_bytes, cap_bytes):
    """Raise the scoped-VMEM limit past the 16/32 MiB default, with headroom."""
    want = max(32 * _MIB, int(footprint_bytes * 1.5) + 4 * _MIB)
    return int(min(want, cap_bytes - 4 * _MIB))


def _pick_tile(dim, target, align=128):
    """(tile, padded_dim): full dim if small, else a dividing 128-multiple
    <= target, else `target` with zero-padding up to a multiple of it."""
    if dim <= target:
        return dim, dim
    for cand in range(target, align - 1, -align):
        if dim % cand == 0:
            return cand, dim
    return target, _round_up(dim, target)


def _fit_tm(m, per_row_bytes, budget_bytes, target):
    """Largest M-tile (multiple of 8, <= target) whose live buffers fit budget."""
    avail_rows = max(budget_bytes, 0) // max(per_row_bytes, 1)
    tm = min(target, max(8, (avail_rows // 8) * 8))
    if m <= tm:
        tm = m
        # Megacore guard: v7x shards "parallel" grid axes across 2 TCs; keep at
        # least two M blocks when M is big enough to be worth splitting.
        if m >= 512:
            tm = _round_up((m + 1) // 2, 8)
    return tm


# ---------------------------------------------------------------------------
# Forward wrapper
# ---------------------------------------------------------------------------

def einmix_forward(x, weight, bias, *, compute_dtype=None, force_tiled=False,
                   tm_target=None, tn_target=None, tk_target=None):
    """EinMix('... dinp -> ... dout', weight_shape='dinp dout', bias_shape='dout')."""
    *lead, dinp = x.shape
    dout = weight.shape[1]
    assert weight.shape[0] == dinp
    assert bias.shape == (dout,)
    out_dtype = x.dtype

    # '...' handling: flatten leading dims (matches torch.reshape in forward).
    m = math.prod(lead) if lead else 1
    x2 = x.reshape(m, dinp)
    w2 = weight
    if compute_dtype is not None:           # gated bf16 (etc.) compute path
        x2 = x2.astype(compute_dtype)
        w2 = w2.astype(compute_dtype)
    b2 = bias.astype(jnp.float32).reshape(1, dout)   # added onto the f32 acc

    in_isz = jnp.dtype(x2.dtype).itemsize
    w_isz = jnp.dtype(w2.dtype).itemsize
    out_isz = jnp.dtype(out_dtype).itemsize

    vmem_cap = _vmem_capacity_bytes()
    budget = int(vmem_cap * 0.7)

    # ---------------- weight-resident fast path ----------------
    w_bytes = dinp * dout * w_isz
    min_stream = 2 * 256 * (dinp * in_isz + dout * out_isz)  # 256-row x/out tiles
    if not force_tiled and 2 * w_bytes + min_stream <= budget:
        per_row = 2 * (dinp * in_isz + dout * out_isz)       # double-buffered x + out
        tm = _fit_tm(m, per_row, budget - 2 * w_bytes, target=tm_target or 1024)
        grid = (pl.cdiv(m, tm),)
        footprint = 2 * w_bytes + tm * per_row + 2 * dout * 4

        cost = pl.CostEstimate(
            flops=2 * m * dinp * dout,
            transcendentals=0,
            bytes_accessed=(m * dinp * in_isz + w_bytes + dout * 4
                            + m * dout * out_isz))

        out2 = pl.pallas_call(
            _einmix_resident_kernel,
            out_shape=jax.ShapeDtypeStruct((m, dout), out_dtype),
            grid_spec=pltpu.PrefetchScalarGridSpec(
                num_scalar_prefetch=0,
                grid=grid,
                in_specs=[
                    pl.BlockSpec((tm, dinp), lambda i: (i, 0)),
                    pl.BlockSpec((dinp, dout), lambda i: (0, 0)),  # resident W
                    pl.BlockSpec((1, dout), lambda i: (0, 0)),     # resident b
                ],
                out_specs=pl.BlockSpec((tm, dout), lambda i: (i, 0)),
            ),
            compiler_params=pltpu.CompilerParams(
                dimension_semantics=("parallel",),
                vmem_limit_bytes=_vmem_limit(footprint, vmem_cap),
            ),
            cost_estimate=cost,
        )(x2, w2, b2)
        return out2.reshape(*lead, dout)

    # ---------------- general tiled path ----------------
    if tk_target is None and dinp <= 1024:
        tk, k_pad = dinp, dinp                  # single K step, no K padding
    else:
        tk, k_pad = _pick_tile(dinp, tk_target or 1024)
    if tn_target is None and dout <= 2048:
        tn, n_pad = dout, dout                  # full-N: x streamed exactly once
    else:
        tn, n_pad = _pick_tile(dout, tn_target or 512)

    # Zero-pad only where required: K (reduction axis, correctness-critical)
    # on both operands; N on the small weight/bias only.  The big activation
    # is never padded along M; ragged M/N edges use masked edge stores.
    if k_pad != dinp:
        x2 = jnp.pad(x2, ((0, 0), (0, k_pad - dinp)))
    if (k_pad, n_pad) != (dinp, dout):
        w2 = jnp.pad(w2, ((0, k_pad - dinp), (0, n_pad - dout)))
    if n_pad != dout:
        b2 = jnp.pad(b2, ((0, 0), (0, n_pad - dout)))

    per_row = 2 * (tk * in_isz + tn * out_isz) + tn * 4       # x, out, f32 acc
    tm = _fit_tm(m, per_row, budget - 2 * tk * tn * w_isz,
                 target=tm_target or 512)
    grid = (pl.cdiv(m, tm), n_pad // tn, k_pad // tk)
    m_grid, n_grid, _ = grid
    footprint = (2 * (tm * tk * in_isz + tk * tn * w_isz + tm * tn * out_isz)
                 + tm * tn * 4)

    cost = pl.CostEstimate(
        flops=2 * m * dinp * dout,
        transcendentals=0,
        # x is re-streamed once per N tile, W once per M tile.
        bytes_accessed=(m * k_pad * in_isz * n_grid
                        + k_pad * n_pad * w_isz * m_grid
                        + n_pad * 4 + m * n_pad * out_isz))

    out2 = pl.pallas_call(
        _einmix_tiled_kernel,
        out_shape=jax.ShapeDtypeStruct((m, dout), out_dtype),
        grid_spec=pltpu.PrefetchScalarGridSpec(
            num_scalar_prefetch=0,
            grid=grid,
            in_specs=[
                pl.BlockSpec((tm, tk), lambda i, j, k: (i, k)),
                pl.BlockSpec((tk, tn), lambda i, j, k: (k, j)),
                pl.BlockSpec((1, tn), lambda i, j, k: (0, j)),
            ],
            out_specs=pl.BlockSpec((tm, tn), lambda i, j, k: (i, j)),
            scratch_shapes=[pltpu.VMEM((tm, tn), jnp.float32)],
        ),
        compiler_params=pltpu.CompilerParams(
            dimension_semantics=("parallel", "parallel", "arbitrary"),
            vmem_limit_bytes=_vmem_limit(footprint, vmem_cap),
        ),
        cost_estimate=cost,
    )(x2, w2, b2)
    return out2.reshape(*lead, dout)


# ---------------------------------------------------------------------------
# Reference + tests
# ---------------------------------------------------------------------------

def _reference(x, weight, bias):
    *lead, dinp = x.shape
    dout = weight.shape[1]
    y = jnp.dot(
        x.reshape(-1, dinp).astype(jnp.float32),
        weight.astype(jnp.float32),
        precision=jax.lax.Precision.HIGHEST,
    ) + bias.astype(jnp.float32)
    return y.reshape(*lead, dout).astype(x.dtype)


if __name__ == "__main__":
    key = jax.random.PRNGKey(0)

    # --- Test 1: small shapes, multiple leading dims -> weight-resident path.
    b1, b2_, seq, dinp, dout = 2, 2, 4, 32, 32
    kx, kw, key = jax.random.split(key, 3)
    x = jax.random.normal(kx, (b1, b2_, seq, dinp), dtype=jnp.float32)
    bound = 1.0 / (dinp ** 0.5)
    weight = jax.random.uniform(kw, (dinp, dout), minval=-bound, maxval=bound,
                                dtype=jnp.float32)
    bias = jnp.zeros((dout,), dtype=jnp.float32)   # EinMix.__init__ zeroes bias

    out = jax.block_until_ready(einmix_forward(x, weight, bias))
    ref = _reference(x, weight, bias)
    assert out.shape == (b1, b2_, seq, dout)
    assert jnp.allclose(out, ref, atol=1e-3, rtol=1e-3)

    # --- Test 2: force the tiled (M, N, K) path with small tile targets so the
    #     K accumulator, K/N zero-padding and ragged-M edge blocks are covered.
    batch, seq, dinp, dout = 3, 7, 600, 200
    kx, kw, kb, key = jax.random.split(key, 4)
    x = jax.random.normal(kx, (batch, seq, dinp), dtype=jnp.float32)
    bound = 1.0 / (dinp ** 0.5)
    weight = jax.random.uniform(kw, (dinp, dout), minval=-bound, maxval=bound,
                                dtype=jnp.float32)
    bias = jax.random.normal(kb, (dout,), dtype=jnp.float32) * 0.01

    out = jax.block_until_ready(
        einmix_forward(x, weight, bias, force_tiled=True,
                       tm_target=8, tn_target=128, tk_target=256))
    ref = _reference(x, weight, bias)
    assert out.shape == (batch, seq, dout)
    assert jnp.allclose(out, ref, atol=5e-3, rtol=5e-3)

    # --- Test 3: gated bf16 compute path (f32 accumulation, f32 output).
    batch, seq, dinp, dout = 2, 8, 256, 128
    kx, kw, kb = jax.random.split(key, 3)
    x = jax.random.normal(kx, (batch, seq, dinp), dtype=jnp.float32)
    bound = 1.0 / (dinp ** 0.5)
    weight = jax.random.uniform(kw, (dinp, dout), minval=-bound, maxval=bound,
                                dtype=jnp.float32)
    bias = jax.random.normal(kb, (dout,), dtype=jnp.float32) * 0.01

    out = jax.block_until_ready(
        einmix_forward(x, weight, bias, compute_dtype=jnp.bfloat16))
    ref = _reference(x.astype(jnp.bfloat16).astype(jnp.float32),
                     weight.astype(jnp.bfloat16).astype(jnp.float32), bias)
    assert out.shape == (batch, seq, dout)
    assert jnp.allclose(out, ref, atol=2e-3, rtol=2e-3)

    print("KERNEL_OK")
</pallas_src>

<mosaic_0001>
module attributes {stable_mosaic.version = 11 : i64} {
  func.func @_einmix_resident_kernel(%arg0: i32, %arg1: memref<16x32xf32, #tpu.memory_space<vmem>>, %arg2: memref<32x32xf32, #tpu.memory_space<vmem>>, %arg3: memref<1x32xf32, #tpu.memory_space<vmem>>, %arg4: memref<16x32xf32, #tpu.memory_space<vmem>>) attributes {dimension_semantics = [#tpu.dimension_semantics<parallel>], iteration_bounds = array<i64: 1>, scalar_prefetch = 0 : i64, scratch_operands = 0 : i64, tpu.core_type = #tpu.core_type<tc>, window_params = [{transform_indices = @transform_0, window_bounds = array<i64: 16, 32>}, {pipeline_mode = #tpu.pipeline_mode<synchronous>, transform_indices = @transform_1, window_bounds = array<i64: 32, 32>}, {pipeline_mode = #tpu.pipeline_mode<synchronous>, transform_indices = @transform_2, window_bounds = array<i64: 1, 32>}, {transform_indices = @transform_3, window_bounds = array<i64: 16, 32>}]} {
    %c0 = arith.constant 0 : index
    %c0_0 = arith.constant 0 : index
    %0 = vector.load %arg1[%c0, %c0_0] : memref<16x32xf32, #tpu.memory_space<vmem>>, vector<16x32xf32>
    %c0_1 = arith.constant 0 : index
    %c0_2 = arith.constant 0 : index
    %1 = vector.load %arg2[%c0_1, %c0_2] : memref<32x32xf32, #tpu.memory_space<vmem>>, vector<32x32xf32>
    %cst = arith.constant dense<0.000000e+00> : vector<16x32xf32>
    %2 = tpu.matmul %0, %1, %cst {dimension_numbers = #tpu.dot_dimension_numbers<[1], [0], [0], [1], [0, 0, 1, 1], [], []>} : vector<16x32xf32>, vector<32x32xf32>, vector<16x32xf32> -> vector<16x32xf32>
    %c0_3 = arith.constant 0 : index
    %c0_4 = arith.constant 0 : index
    %3 = vector.load %arg3[%c0_3, %c0_4] : memref<1x32xf32, #tpu.memory_space<vmem>>, vector<1x32xf32>
    %4 = vector.broadcast %3 : vector<1x32xf32> to vector<16x32xf32>
    %5 = arith.addf %2, %4 : vector<16x32xf32>
    %c0_5 = arith.constant 0 : index
    %c0_6 = arith.constant 0 : index
    %6 = vector.load %arg4[%c0_5, %c0_6] : memref<16x32xf32, #tpu.memory_space<vmem>>, vector<16x32xf32>
    tpu.vector_store %arg4[%c0_5, %c0_6], %5 {strides = array<i32>} : memref<16x32xf32, #tpu.memory_space<vmem>>, vector<16x32xf32>,
    return
  }
  func.func @transform_0(%arg0: i32) -> (i32, i32) {
    %c0_i32 = arith.constant 0 : i32
    %c0_i32_0 = arith.constant 0 : i32
    return %arg0, %c0_i32 : i32, i32
  }
  func.func @transform_1(%arg0: i32) -> (i32, i32) {
    %c0_i32 = arith.constant 0 : i32
    %c0_i32_0 = arith.constant 0 : i32
    %c0_i32_1 = arith.constant 0 : i32
    return %c0_i32, %c0_i32_0 : i32, i32
  }
  func.func @transform_2(%arg0: i32) -> (i32, i32) {
    %c0_i32 = arith.constant 0 : i32
    %c0_i32_0 = arith.constant 0 : i32
    %c0_i32_1 = arith.constant 0 : i32
    return %c0_i32, %c0_i32_0 : i32, i32
  }
  func.func @transform_3(%arg0: i32) -> (i32, i32) {
    %c0_i32 = arith.constant 0 : i32
    %c0_i32_0 = arith.constant 0 : i32
    return %arg0, %c0_i32 : i32, i32
  }
}

</mosaic_0001>

<llo_original>
// kernel: tpu_custom_call.1
$region0: #{tpu_custom_call.1}
  #allocation0 [shape = 'u32[]', space=smem, size = 0x4, offset = 0x4, fixed_abs, tag = 'smem constant byte address 0x4 - core index']
  #allocation1 [shape = 'u32[144,128]{1,0:T(1,128)}', space=vmem, size = 0x12000, scoped, tag = 'internal scratch']
  %s0 = inlined_call_operand.hbm [shape: f32[16,32], index: 0, kind: input, shape index: {}]
  %s1 = inlined_call_operand.hbm [shape: f32[32,32], index: 1, kind: input, shape index: {}]
  %s2 = inlined_call_operand.vmem [shape: f32[1,32], index: 2, kind: input, shape index: {}]
  %s3 = inlined_call_operand.hbm [shape: f32[16,32], index: 3, kind: output, shape index: {}]
  %s4 = sld [smem:[#allocation0]]
  $region30: #{tpu_custom_call.1} parent=0
    _
  %s6 = ssub.s32 1, %s4
  %s7 = scalar_select 0, %s6, %s4
  $region1: #{tpu_custom_call.1} parent=0
    #allocation2 [shape = 'u8[8192]{0}', space=vmem, size = 0x2000, scoped, tag = 'input window, operand 0, single buffered']
    #allocation3 [shape = 's32[1]{0}', space=sflag, size = 0x4, scoped, tag = 'scoped memory for tpu_custom_call.1']
    #allocation4 [shape = 's32[1]{0}', space=sflag, size = 0x4, scoped, tag = 'scoped memory for tpu_custom_call.1']
    #allocation5 [shape = 'u8[16384]{0}', space=vmem, size = 0x4000, scoped, tag = 'input window, operand 1, single buffered']
    #allocation6 [shape = 's32[1]{0}', space=sflag, size = 0x4, scoped, tag = 'scoped memory for tpu_custom_call.1']
    #allocation7 [shape = 'u8[8192]{0}', space=vmem, size = 0x2000, scoped, tag = 'output window, operand 0, single buffered']
    %8 = vsyncpa [#allocation3], 0
    %9 = vsyncpa [#allocation6], 0
    %10 = vsyncpa [#allocation4], 0
    // Predicated region
    $region2: #{tpu_custom_call.1} parent=1 // pred_check
      _
    $region3: #{tpu_custom_call.1} parent=1 // pred_check_branch
      %12 = sbr.rel (0) target = $region5
    $region4: #{tpu_custom_call.1} parent=1 // pred_region
      %s14 = ssub.s32 256, 256
      %15 = vsyncadd [#allocation3], %s14
      %s16 = sshll.u32 [#allocation2], 4
      %s17 = int_to_ptr.vmem [resolvable:$true] %s16
      %22 = dma.hbm_to_vmem [thread:$0]  %s0, 256, %s17, [#allocation3], 128, 128, 8
    $region5: #{tpu_custom_call.1} parent=1 // pred_fallthru
      _
    // Predicated region
    $region6: #{tpu_custom_call.1} parent=1 // pred_check
      _
    $region7: #{tpu_custom_call.1} parent=1 // pred_check_branch
      %24 = sbr.rel (0) target = $region9
    $region8: #{tpu_custom_call.1} parent=1 // pred_region
      %s26 = ssub.s32 512, 512
      %27 = vsyncadd [#allocation6], %s26
      %s28 = sshll.u32 [#allocation5], 4
      %s29 = int_to_ptr.vmem [resolvable:$true] %s28
      %34 = dma.hbm_to_vmem [thread:$0]  %s1, 512, %s29, [#allocation6], 128, 128, 8
    $region9: #{tpu_custom_call.1} parent=1 // pred_fallthru
      _
    // Predicated region
    $region10: #{tpu_custom_call.1} parent=1 // pred_check
      _
    $region11: #{tpu_custom_call.1} parent=1 // pred_check_branch
      %36 = sbr.rel (0) target = $region13
    $region12: #{tpu_custom_call.1} parent=1 // pred_region
      _
    $region13: #{tpu_custom_call.1} parent=1 // pred_fallthru
      _
    // Predicated region
    $region14: #{tpu_custom_call.1} parent=1 // pred_check
      _
    $region15: #{tpu_custom_call.1} parent=1 // pred_check_branch
      %38 = sbr.rel (0) target = $region17
    $region16: #{tpu_custom_call.1} parent=1 // pred_region
      %39 = dma.done [#allocation3], 256
    $region17: #{tpu_custom_call.1} parent=1 // pred_fallthru
      _
    // Predicated region
    $region18: #{tpu_custom_call.1} parent=1 // pred_check
      _
    $region19: #{tpu_custom_call.1} parent=1 // pred_check_branch
      %41 = sbr.rel (0) target = $region21
    $region20: #{tpu_custom_call.1} parent=1 // pred_region
      %42 = dma.done [#allocation6], 512
    $region21: #{tpu_custom_call.1} parent=1 // pred_fallthru
      _
    %v43 = vld [vmem:[#allocation2] sm:$0xff]
    %v44 = vld [vmem:[#allocation2 + $0x8] sm:$0xff]
    %v45 = vld [vmem:[#allocation5] sm:$0xff]
    %v46 = vld [vmem:[#allocation5 + $0x8] sm:$0xff]
    %v47 = vld [vmem:[#allocation5 + $0x10] sm:$0xff]
    %v48 = vld [vmem:[#allocation5 + $0x18] sm:$0xff]
    %v49 = vld [vmem:[%s2] sm:$0x1]
    %v51 = vlaneseq
    %v52 = vshrl.u32 %v51, 7
    %v53 = vsub.s32 0, %v52
    %v54 = vrot.slane %v49, %v53
    %vm56 = vcmask 261120
    %v58 = vsel %vm56, %v43, 0
    %v61 = vsel %vm56, %v44, 0
    %63 = vmatprep.subr.mxu0 0.0
    %64 = vmatpush1.msra.mxu0 %v45
    %65 = vmatprep.subr.mxu0 0.0
    %66 = vmatpush1.msra.mxu0 %v46
    %67 = vmatprep.subr.mxu0 0.0
    %68 = vmatpush1.msra.mxu0 %v47
    %69 = vmatprep.subr.mxu0 0.0
    %70 = vmatpush1.msra.mxu0 %v48
    %71 = vmatprep.subr.mxu0 0.0
    %72 = vmatpush1.msra.mxu0 0.0
    %73 = vmatprep.subr.mxu0 0.0
    %74 = vmatpush1.msra.mxu0 0.0
    %75 = vmatprep.subr.mxu0 0.0
    %76 = vmatpush1.msra.mxu0 0.0
    %77 = vmatprep.subr.mxu0 0.0
    %78 = vmatpush1.msra.mxu0 0.0
    %79 = vmatprep.subr.mxu0 0.0
    %80 = vmatpush1.msra.mxu0 0.0
    %81 = vmatprep.subr.mxu0 0.0
    %82 = vmatpush1.msra.mxu0 0.0
    %83 = vmatprep.subr.mxu0 0.0
    %84 = vmatpush1.msra.mxu0 0.0
    %85 = vmatprep.subr.mxu0 0.0
    %86 = vmatpush1.msra.mxu0 0.0
    %87 = vmatprep.subr.mxu0 0.0
    %88 = vmatpush1.msra.mxu0 0.0
    %89 = vmatprep.subr.mxu0 0.0
    %90 = vmatpush1.msra.mxu0 0.0
    %91 = vmatprep.subr.mxu0 0.0
    %92 = vmatpush1.msra.mxu0 0.0
    %93 = vmatprep.subr.mxu0 0.0
    %94 = vmatpush1.msra.mxu0 0.0
    %95 = vmatprep.subr.mxu0 0.0
    %96 = vmatpush1.msra.mxu0 0.0
    %97 = vmatprep.subr.mxu0 0.0
    %98 = vmatpush1.msra.mxu0 0.0
    %99 = vmatprep.subr.mxu0 0.0
    %100 = vmatpush1.msra.mxu0 0.0
    %101 = vmatprep.subr.mxu0 0.0
    %102 = vmatpush1.msra.mxu0 0.0
    %103 = vmatprep.subr.mxu0 0.0
    %104 = vmatpush1.msra.mxu0 0.0
    %105 = vmatprep.subr.mxu0 0.0
    %106 = vmatpush1.msra.mxu0 0.0
    %107 = vmatprep.subr.mxu0 0.0
    %108 = vmatpush1.msra.mxu0 0.0
    %109 = vmatprep.subr.mxu0 0.0
    %110 = vmatpush1.msra.mxu0 0.0
    %111 = vmatprep.subr.mxu0 0.0
    %112 = vmatpush1.msra.mxu0 0.0
    %113 = vmatprep.subr.mxu0 0.0
    %114 = vmatpush1.msra.mxu0 0.0
    %115 = vmatprep.subr.mxu0 0.0
    %116 = vmatpush1.msra.mxu0 0.0
    %117 = vmatprep.subr.mxu0 0.0
    %118 = vmatpush1.msra.mxu0 0.0
    %119 = vmatprep.subr.mxu0 0.0
    %120 = vmatpush1.msra.mxu0 0.0
    %121 = vmatprep.subr.mxu0 0.0
    %122 = vmatpush1.msra.mxu0 0.0
    %123 = vmatprep.subr.mxu0 0.0
    %124 = vmatpush1.msra.mxu0 0.0
    %125 = vmatprep.subr.mxu0 0.0
    %126 = vmatpush1.msra.mxu0 0.0
    %127 = vmatprep.mubr.f32.mxu0 0.0
    %128 = vmatmul.mubr.f32.gmra.mrb[0].mxu0 %v58
    %v129 = vpop.f32.mrb[0].mxu0
    %v130 = vadd.f32 %v54, %v129
    %v131 = vpop.f32.mrb[0].mxu0
    %132 = vmatprep.mubr.f32.mxu0 0.0
    %133 = vmatmul.mubr.f32.gmra.mrb[0].mxu0 %v61
    %v134 = vpop.f32.mrb[0].mxu0
    %v135 = vadd.f32 %v54, %v134
    %v136 = vpop.f32.mrb[0].mxu0
    %137 = vdwg.mxu0
    %138 = vst.msk [vmem:[#allocation7] sm:$0xff] %vm56, %v130
    %139 = vst.msk [vmem:[#allocation7 + $0x8] sm:$0xff] %vm56, %v135
    // Predicated region
    $region22: #{tpu_custom_call.1} parent=1 // pred_check
      _
    $region23: #{tpu_custom_call.1} parent=1 // pred_check_branch
      %141 = sbr.rel (0) target = $region25
    $region24: #{tpu_custom_call.1} parent=1 // pred_region
      %s143 = ssub.s32 256, 256
      %144 = vsyncadd [#allocation4], %s143
      %s145 = sshll.u32 [#allocation7], 4
      %s146 = int_to_ptr.vmem [resolvable:$true] %s145
      %151 = dma.vmem_to_hbm [thread:$0]  %s146, 256, %s3, [#allocation4], 128, 128, 8
    $region25: #{tpu_custom_call.1} parent=1 // pred_fallthru
      _
    // Predicated region
    $region26: #{tpu_custom_call.1} parent=1 // pred_check
      _
    $region27: #{tpu_custom_call.1} parent=1 // pred_check_branch
      %153 = sbr.rel (0) target = $region29
    $region28: #{tpu_custom_call.1} parent=1 // pred_region
      %154 = dma.done [#allocation4], 256
    $region29: #{tpu_custom_call.1} parent=1 // pred_fallthru
      _
    %155 = vsyncpa [#allocation3], 1
    %156 = vsyncpa [#allocation6], 1
    %157 = vsyncpa [#allocation4], 1

</llo_original>
